<compile_context>
chip_gen: v7x
topology: tpu7x:2x2x1
jax: 0.10.0
libtpu: 0.0.40
codegen_flags: <defaults>
</compile_context>

<pallas_src>
import functools

import numpy as np
import jax
import jax.numpy as jnp
from jax import lax
from jax.experimental import pallas as pl
from jax.experimental.pallas import tpu as pltpu


def _choose_tile_p(P, want):
    """Largest legal lane tile: full P if small, else a multiple of 128."""
    if P <= want:
        return P
    return max(128, (want // 128) * 128)


# ---------------------------------------------------------------------------
# offset_and_weight conv (standard conv): im2col in the wrapper, matmul + bias
# inside the Pallas kernel, output already channel-major / lane-dense.
# ---------------------------------------------------------------------------
def _offset_conv_kernel(p_ref, w_ref, b_ref, o_ref):
    # p_ref: (1, C*KK, TP)  w_ref: (Cout, C*KK)  b_ref: (Cout, 1)  o_ref: (1, Cout, TP)
    # Kept in f32: these are sampling positions, bf16 would lose position precision.
    r = jnp.dot(w_ref[...], p_ref[0], preferred_element_type=jnp.float32)
    o_ref[0] = (r + b_ref[...]).astype(o_ref.dtype)


def _offset_conv_pallas(x, weight, bias, kernel_size, padding, stride, dilation, *,
                        tile_p=256):
    B, C, H, W = x.shape
    Cout = weight.shape[0]
    KH, KW = kernel_size
    ph, pw = padding
    sh, sw = stride
    dh, dw = dilation
    OH = (H + 2 * ph - dh * (KH - 1) - 1) // sh + 1
    OW = (W + 2 * pw - dw * (KW - 1) - 1) // sw + 1
    P = OH * OW
    CKK = C * KH * KW

    # im2col (channel-major rows c*KK + tap, spatial minor) so the kernel's output
    # is already lane-dense (..., P) and needs no transposes afterwards.
    xp = jnp.pad(x, ((0, 0), (0, 0), (ph, ph), (pw, pw)))
    cols = []
    for i in range(KH):
        for j in range(KW):
            cols.append(xp[:, :, i * dh:i * dh + (OH - 1) * sh + 1:sh,
                               j * dw:j * dw + (OW - 1) * sw + 1:sw])
    patches = jnp.stack(cols, axis=2).reshape(B, CKK, P).astype(jnp.float32)
    w_mat = weight.reshape(Cout, CKK).astype(jnp.float32)   # (cin, tap) ordering matches
    b_col = bias.reshape(Cout, 1).astype(jnp.float32)

    tp = _choose_tile_p(P, tile_p)
    n_tiles = pl.cdiv(P, tp)

    out = pl.pallas_call(
        _offset_conv_kernel,
        out_shape=jax.ShapeDtypeStruct((B, Cout, P), jnp.float32),
        grid_spec=pltpu.PrefetchScalarGridSpec(
            num_scalar_prefetch=0,
            grid=(B, n_tiles),
            in_specs=[
                pl.BlockSpec((1, CKK, tp), lambda b, t: (b, 0, t)),
                pl.BlockSpec((Cout, CKK), lambda b, t: (0, 0)),
                pl.BlockSpec((Cout, 1), lambda b, t: (0, 0)),
            ],
            out_specs=pl.BlockSpec((1, Cout, tp), lambda b, t: (b, 0, t)),
        ),
        compiler_params=pltpu.CompilerParams(
            dimension_semantics=("parallel", "parallel"),
            vmem_limit_bytes=32 * 1024 * 1024),
    )(patches, w_mat, b_col)
    return out, OH, OW


# ---------------------------------------------------------------------------
# modulated deformable convolution (DCNv2) kernel
# ---------------------------------------------------------------------------
def _dcn_kernel(x_ref, ow_ref, w_ref, b_ref, o_ref, smp_ref, *,
                H, W, OW, KH, KW, C, stride, padding, dilation, tile_p):
    # x_ref  : (1, C, H*W)       bf16  (full image, resident across the P tiles)
    # ow_ref : (1, 3*KK, TP)     f32   raw offset-conv tile  [offy | offx | pre-sigmoid mask]
    # w_ref  : (O, KK*C)         bf16  dcn weight, cols ordered (tap, cin)
    # b_ref  : (O, 1)            f32
    # o_ref  : (1, O, TP)        f32
    # smp_ref: (KK*C, TP)        f32 VMEM scratch holding the bilinear-sampled taps
    KK = KH * KW
    HW = H * W

    x_bf = x_ref[0]                                   # (C, HW) bf16
    om = ow_ref[0].astype(jnp.float32)                # (3KK, TP)
    offy = om[0:KK]
    offx = om[KK:2 * KK]
    mask = jax.nn.sigmoid(om[2 * KK:3 * KK])          # modulation (sigmoid fused here)

    # input pixel coordinates, kept as (HW, 1) columns and broadcast against (1, TP)
    qi = lax.broadcasted_iota(jnp.int32, (HW, 1), 0)
    qy = (qi // W).astype(jnp.float32)
    qx = (qi % W).astype(jnp.float32)

    # output pixel coordinates for this P tile
    p = lax.broadcasted_iota(jnp.int32, (1, tile_p), 1) + pl.program_id(1) * tile_p
    base_y = ((p // OW) * stride[0] - padding[0]).astype(jnp.float32)   # (1, TP)
    base_x = ((p % OW) * stride[1] - padding[1]).astype(jnp.float32)

    for k in range(KK):
        ki, kj = k // KW, k % KW
        py = base_y + float(ki * dilation[0]) + offy[k:k + 1, :]        # (1, TP)
        px = base_x + float(kj * dilation[1]) + offx[k:k + 1, :]
        # Dense "tent" sampling matrix:  S[q,p] = relu(1-|qy-py|)*relu(1-|qx-px|).
        # This reproduces DCNv2's 4-corner bilinear weights and its zero handling
        # outside the image (rows outside [0,H)x[0,W) simply never match), with no
        # integer compares / one-hot builds / gathers.
        wy = jnp.maximum(1.0 - jnp.abs(qy - py), 0.0)                   # (HW, TP)
        wx = jnp.maximum(1.0 - jnp.abs(qx - px), 0.0)
        s_bf = (wy * wx).astype(jnp.bfloat16)
        sampled = jnp.dot(x_bf, s_bf, preferred_element_type=jnp.float32)   # (C, TP)
        # modulation applied on the small (C, TP) result, not the (HW, TP) matrix
        smp_ref[k * C:(k + 1) * C, :] = sampled * mask[k:k + 1, :]

    # single fused weight contraction over (tap, cin) on the MXU
    acc = jnp.dot(w_ref[...], smp_ref[...].astype(jnp.bfloat16),
                  preferred_element_type=jnp.float32)                   # (O, TP)
    o_ref[0] = (acc + b_ref[...]).astype(o_ref.dtype)


def _dcn_v2_pallas(x, weight, bias, off_raw, padding, stride, dilation, *, tile_p=256):
    B, C, H, W = x.shape
    O, _, KH, KW = weight.shape
    KK = KH * KW
    OH = (H + 2 * padding[0] - dilation[0] * (KH - 1) - 1) // stride[0] + 1
    OW = (W + 2 * padding[1] - dilation[1] * (KW - 1) - 1) // stride[1] + 1
    P = OH * OW
    assert off_raw.shape == (B, 3 * KK, P)

    tp = _choose_tile_p(P, tile_p)
    n_tiles = pl.cdiv(P, tp)

    x_flat = x.reshape(B, C, H * W).astype(jnp.bfloat16)
    w_flat = weight.transpose(0, 2, 3, 1).reshape(O, KK * C).astype(jnp.bfloat16)
    b_col = bias.reshape(O, 1).astype(jnp.float32)

    kernel = functools.partial(
        _dcn_kernel, H=H, W=W, OW=OW, KH=KH, KW=KW, C=C,
        stride=stride, padding=padding, dilation=dilation, tile_p=tp)

    out = pl.pallas_call(
        kernel,
        out_shape=jax.ShapeDtypeStruct((B, O, P), jnp.float32),
        grid_spec=pltpu.PrefetchScalarGridSpec(
            num_scalar_prefetch=0,
            grid=(B, n_tiles),
            in_specs=[
                pl.BlockSpec((1, C, H * W), lambda b, t: (b, 0, 0)),     # x resident per batch
                pl.BlockSpec((1, 3 * KK, tp), lambda b, t: (b, 0, t)),
                pl.BlockSpec((O, KK * C), lambda b, t: (0, 0)),
                pl.BlockSpec((O, 1), lambda b, t: (0, 0)),
            ],
            out_specs=pl.BlockSpec((1, O, tp), lambda b, t: (b, 0, t)),
            scratch_shapes=[pltpu.VMEM((KK * C, tp), jnp.float32)],
        ),
        compiler_params=pltpu.CompilerParams(
            dimension_semantics=("parallel", "parallel"),
            vmem_limit_bytes=32 * 1024 * 1024),
    )(x_flat, off_raw, w_flat, b_col)
    return out.reshape(B, O, OH, OW)


# ---------------------------------------------------------------------------
# full DeformableConv.forward
# ---------------------------------------------------------------------------
def deformable_conv_forward(x, dcn_weight, dcn_bias, off_weight, off_bias,
                            kernel_size, padding, stride, dilation,
                            deformable_groups=1, tile_p=256):
    # TODO(synk): deformable_groups > 1 channel grouping not implemented (dg == 1 only).
    assert deformable_groups == 1
    B, C, H, W = x.shape
    KH, KW = kernel_size

    # offset_and_weight conv always uses padding = kernel // 2 (as in the module)
    raw, OH2, OW2 = _offset_conv_pallas(
        x, off_weight, off_bias, kernel_size, (KH // 2, KW // 2), stride, dilation,
        tile_p=tile_p)

    OH = (H + 2 * padding[0] - dilation[0] * (KH - 1) - 1) // stride[0] + 1
    OW = (W + 2 * padding[1] - dilation[1] * (KW - 1) - 1) // stride[1] + 1
    # The torch module asserts the offsets share the input spatial dims, and the DCN
    # native impl indexes them per output position -> geometries must agree (stride=1,
    # "same"-style padding). Anything else is unsupported, as in the original module use.
    assert (OH2, OW2) == (H, W) and (OH, OW) == (OH2, OW2)

    return _dcn_v2_pallas(x, dcn_weight, dcn_bias, raw, padding, stride, dilation,
                          tile_p=tile_p)


# ---------------------------------------------------------------------------
# pure-JAX reference (gather-based DCNv2) for correctness checking
# ---------------------------------------------------------------------------
def _reference_forward(x, dcn_w, dcn_b, off_w, off_b, kernel_size, padding, stride, dilation):
    B, C, H, W = x.shape
    O = dcn_w.shape[0]
    KH, KW = kernel_size
    KK = KH * KW
    sh, sw = stride
    ph, pw = padding
    dh, dw = dilation

    raw = lax.conv_general_dilated(
        x, off_w, window_strides=stride,
        padding=[(KH // 2, KH // 2), (KW // 2, KW // 2)],
        rhs_dilation=dilation, dimension_numbers=("NCHW", "OIHW", "NCHW"))
    raw = raw + off_b.reshape(1, -1, 1, 1)
    offy, offx = raw[:, 0:KK], raw[:, KK:2 * KK]
    mask = jax.nn.sigmoid(raw[:, 2 * KK:3 * KK])

    OH = (H + 2 * ph - dh * (KH - 1) - 1) // sh + 1
    OW = (W + 2 * pw - dw * (KW - 1) - 1) // sw + 1
    oh = jnp.arange(OH).reshape(OH, 1)
    ow = jnp.arange(OW).reshape(1, OW)
    x_flat = x.reshape(B, C, H * W)

    out = jnp.zeros((B, O, OH, OW), jnp.float32)
    for k in range(KK):
        ki, kj = k // KW, k % KW
        py = (oh * sh - ph + ki * dh)[None].astype(jnp.float32) + offy[:, k]
        px = (ow * sw - pw + kj * dw)[None].astype(jnp.float32) + offx[:, k]
        y0 = jnp.floor(py)
        x0 = jnp.floor(px)
        val = jnp.zeros((B, C, OH, OW), jnp.float32)
        for dy in (0, 1):
            for dx in (0, 1):
                yy = y0 + dy
                xx = x0 + dx
                wbl = (1.0 - jnp.abs(yy - py)) * (1.0 - jnp.abs(xx - px))
                valid = ((yy >= 0) & (yy <= H - 1) & (xx >= 0) & (xx <= W - 1)).astype(jnp.float32)
                yyc = jnp.clip(yy, 0, H - 1).astype(jnp.int32)
                xxc = jnp.clip(xx, 0, W - 1).astype(jnp.int32)
                idx = (yyc * W + xxc).reshape(B, 1, OH * OW)
                v = jnp.take_along_axis(x_flat, jnp.broadcast_to(idx, (B, C, OH * OW)), axis=2)
                val = val + v.reshape(B, C, OH, OW) * (wbl * valid)[:, None]
        val = val * mask[:, k][:, None]
        out = out + jnp.einsum("oc,bchw->bohw", dcn_w[:, :, ki, kj], val)
    return out + dcn_b.reshape(1, O, 1, 1)


if __name__ == "__main__":
    B, Cin, Cout, H, W, K = 2, 4, 8, 16, 16, 3
    dg = 1
    padding = (K // 2, K // 2)   # so the DCN output spatial == offset spatial == input spatial
    stride = (1, 1)
    dilation = (1, 1)

    key = jax.random.PRNGKey(0)
    k_x, k_w, k_b, k_ow, k_ob = jax.random.split(key, 5)
    x = jax.random.normal(k_x, (B, Cin, H, W), jnp.float32)

    # DeformableConV2.reset_parameters: weight ~ U(-stdv, stdv)
    n = Cin * K * K
    stdv = 1.0 / float(np.sqrt(n))
    dcn_weight = jax.random.uniform(k_w, (Cout, Cin, K, K), jnp.float32, -stdv, stdv)
    dcn_bias = 0.1 * jax.random.normal(k_b, (Cout,), jnp.float32)

    off_cout = dg * 3 * K * K
    fwd = functools.partial(
        deformable_conv_forward, kernel_size=(K, K), padding=padding,
        stride=stride, dilation=dilation, deformable_groups=dg, tile_p=128)

    # --- Test 1: module's reset_parameters (zero-init offset conv) ------------
    # offsets == 0, modulation == sigmoid(0) == 0.5  ->  0.5 * conv(x, w) + bias
    off_w0 = jnp.zeros((off_cout, Cin, K, K), jnp.float32)
    off_b0 = jnp.zeros((off_cout,), jnp.float32)
    out0 = jax.block_until_ready(fwd(x, dcn_weight, dcn_bias, off_w0, off_b0))
    assert out0.shape == (B, Cout, H, W)
    ref0 = 0.5 * lax.conv_general_dilated(
        x, dcn_weight, window_strides=stride,
        padding=[(padding[0], padding[0]), (padding[1], padding[1])],
        rhs_dilation=dilation,
        dimension_numbers=("NCHW", "OIHW", "NCHW")) + dcn_bias.reshape(1, Cout, 1, 1)
    np.testing.assert_allclose(np.asarray(out0), np.asarray(ref0), rtol=2e-2, atol=2e-2)

    # --- Test 2: non-trivial offsets/modulation (exercises bilinear sampling) --
    off_w1 = 0.05 * jax.random.normal(k_ow, (off_cout, Cin, K, K), jnp.float32)
    off_b1 = 0.5 * jax.random.normal(k_ob, (off_cout,), jnp.float32)
    out1 = jax.block_until_ready(fwd(x, dcn_weight, dcn_bias, off_w1, off_b1))
    ref1 = _reference_forward(x, dcn_weight, dcn_bias, off_w1, off_b1,
                              (K, K), padding, stride, dilation)
    np.testing.assert_allclose(np.asarray(out1), np.asarray(ref1), rtol=2e-2, atol=2e-2)

    print("KERNEL_OK")
</pallas_src>

<mosaic_0001>
module attributes {stable_mosaic.version = 11 : i64} {
  func.func @_offset_conv_kernel(%arg0: i32, %arg1: i32, %arg2: memref<1x36x128xf32, #tpu.memory_space<vmem>>, %arg3: memref<27x36xf32, #tpu.memory_space<vmem>>, %arg4: memref<27x1xf32, #tpu.memory_space<vmem>>, %arg5: memref<1x27x128xf32, #tpu.memory_space<vmem>>) attributes {dimension_semantics = [#tpu.dimension_semantics<parallel>, #tpu.dimension_semantics<parallel>], iteration_bounds = array<i64: 2, 2>, scalar_prefetch = 0 : i64, scratch_operands = 0 : i64, tpu.core_type = #tpu.core_type<tc>, window_params = [{transform_indices = @transform_0, window_bounds = array<i64: 1, 36, 128>}, {pipeline_mode = #tpu.pipeline_mode<synchronous>, transform_indices = @transform_1, window_bounds = array<i64: 27, 36>}, {pipeline_mode = #tpu.pipeline_mode<synchronous>, transform_indices = @transform_2, window_bounds = array<i64: 27, 1>}, {transform_indices = @transform_3, window_bounds = array<i64: 1, 27, 128>}]} {
    %c0 = arith.constant 0 : index
    %c0_0 = arith.constant 0 : index
    %0 = vector.load %arg3[%c0, %c0_0] : memref<27x36xf32, #tpu.memory_space<vmem>>, vector<27x36xf32>
    %c0_1 = arith.constant 0 : index
    %c0_2 = arith.constant 0 : index
    %c0_3 = arith.constant 0 : index
    %1 = vector.load %arg2[%c0_1, %c0_2, %c0_3] : memref<1x36x128xf32, #tpu.memory_space<vmem>>, vector<1x36x128xf32>
    %2 = vector.shape_cast %1 : vector<1x36x128xf32> to vector<36x128xf32>
    %cst = arith.constant dense<0.000000e+00> : vector<27x128xf32>
    %3 = tpu.matmul %0, %2, %cst {dimension_numbers = #tpu.dot_dimension_numbers<[1], [0], [0], [1], [0, 0, 1, 1], [], []>} : vector<27x36xf32>, vector<36x128xf32>, vector<27x128xf32> -> vector<27x128xf32>
    %c0_4 = arith.constant 0 : index
    %c0_5 = arith.constant 0 : index
    %4 = vector.load %arg4[%c0_4, %c0_5] : memref<27x1xf32, #tpu.memory_space<vmem>>, vector<27x1xf32>
    %5 = vector.broadcast %4 : vector<27x1xf32> to vector<27x128xf32>
    %6 = arith.addf %3, %5 : vector<27x128xf32>
    %c0_6 = arith.constant 0 : index
    %c0_7 = arith.constant 0 : index
    %c0_8 = arith.constant 0 : index
    %7 = vector.load %arg5[%c0_6, %c0_7, %c0_8] : memref<1x27x128xf32, #tpu.memory_space<vmem>>, vector<1x27x128xf32>
    %8 = vector.shape_cast %7 : vector<1x27x128xf32> to vector<27x128xf32>
    %9 = vector.shape_cast %6 : vector<27x128xf32> to vector<1x27x128xf32>
    tpu.vector_store %arg5[%c0_6, %c0_7, %c0_8], %9 {strides = array<i32>} : memref<1x27x128xf32, #tpu.memory_space<vmem>>, vector<1x27x128xf32>,
    return
  }
  func.func @transform_0(%arg0: i32, %arg1: i32) -> (i32, i32, i32) {
    %c0_i32 = arith.constant 0 : i32
    %c0_i32_0 = arith.constant 0 : i32
    return %arg0, %c0_i32, %arg1 : i32, i32, i32
  }
  func.func @transform_1(%arg0: i32, %arg1: i32) -> (i32, i32) {
    %c0_i32 = arith.constant 0 : i32
    %c0_i32_0 = arith.constant 0 : i32
    %c0_i32_1 = arith.constant 0 : i32
    return %c0_i32, %c0_i32_0 : i32, i32
  }
  func.func @transform_2(%arg0: i32, %arg1: i32) -> (i32, i32) {
    %c0_i32 = arith.constant 0 : i32
    %c0_i32_0 = arith.constant 0 : i32
    %c0_i32_1 = arith.constant 0 : i32
    return %c0_i32, %c0_i32_0 : i32, i32
  }
  func.func @transform_3(%arg0: i32, %arg1: i32) -> (i32, i32, i32) {
    %c0_i32 = arith.constant 0 : i32
    %c0_i32_0 = arith.constant 0 : i32
    return %arg0, %c0_i32, %arg1 : i32, i32, i32
  }
}

</mosaic_0001>

<llo_original>
// kernel: tpu_custom_call.1
$region0: #{tpu_custom_call.1}
  #allocation0 [shape = 'u32[]', space=smem, size = 0x4, offset = 0x4, fixed_abs, tag = 'smem constant byte address 0x4 - core index']
  #allocation1 [shape = 'u32[144,128]{1,0:T(1,128)}', space=vmem, size = 0x12000, scoped, tag = 'internal scratch']
  %s0 = inlined_call_operand.vmem [shape: f32[2,36,256], index: 0, kind: input, shape index: {}]
  %s1 = inlined_call_operand.vmem [shape: f32[27,36], index: 1, kind: input, shape index: {}]
  %s2 = inlined_call_operand.vmem [shape: f32[27,1], index: 2, kind: input, shape index: {}]
  %s3 = inlined_call_operand.vmem [shape: f32[2,27,256], index: 3, kind: output, shape index: {}]
  %s4 = sld [smem:[#allocation0]]
  $region117: #{tpu_custom_call.1} parent=0
    _
  %s6 = ssub.s32 1, %s4
  %s7 = scalar_select 0, %s6, %s4
  $region1: #{tpu_custom_call.1} parent=0
    #allocation2 [shape = 'u8[40960]{0}', space=vmem, size = 0xa000, scoped, tag = 'input window, operand 0']
    #allocation3 [shape = 'u8[32768]{0}', space=vmem, size = 0x8000, scoped, tag = 'output window, operand 0']
    loop: start=0, step=1, limit=6
    $region2: #{tpu_custom_call.1} parent=1 // loop_pre_header
      _
    $region3: #{tpu_custom_call.1} parent=1 // loop_header
      %s9 = sphi 0, %s13
      %p10 = scmp.ge.s32.totalorder %s9, 6
      %s16 = sphi 0, %s28
      %s17 = sphi 0, %s24
      %s18 = sphi 0, %s16
      %s19 = sphi 0, %s17
      %s20 = sphi 0, %s18
      %s21 = sphi 0, %s19
      %s33 = sphi 0, %s35
      %s36 = sphi 0, %s33
      %s37 = sphi 0, %s36
      %s53 = sphi 0, %s37
      %s57 = sphi 0, %s57
      %s59 = sphi 0, %s57
      %s60 = sphi 0, %s59
      %s74 = sphi 0, %s60
      %s78 = sphi 0, %s78
      %s80 = sphi 0, %s78
      %s81 = sphi 0, %s80
      %s95 = sphi 0, %s81
      %s103 = sphi 0, %s105
      %s106 = sphi 0, %s103
      %s107 = sphi 0, %s106
      %s123 = sphi 0, %s107
    $region4: #{tpu_custom_call.1} parent=1 // loop_header_branch
      %12 = sbr.rel (%p10) target = $region8
    $region5: #{tpu_custom_call.1} parent=1 // loop_body
      %s14 = ssub.s32 %s9, 1
      %s15 = ssub.s32 %s9, 2
      %s22 = sadd.s32 1, %s17
      %p23 = scmp.ge.s32.totalorder %s22, 2
      %s24 = scalar_select %p23, 0, %s22
      %s25 = sadd.s32 1, %s16
      %s26 = scalar_select %p23, %s25, %s16
      %p27 = scmp.ge.s32.totalorder %s26, 2
      %s28 = scalar_select %p27, 0, %s26
      %s29 = ssub.s32 %s16, %s28
      %s30 = ssub.s32 %s17, %s24
      %s31 = sor.u32 %s29, %s30
      %p32 = scmp.eq.s32.totalorder %s31, 0
      %s34 = sadd.s32 %s33, 1
      %s35 = scalar_select %p32, %s33, %s34
      %p38 = pneg %p32
      %p39 = scmp.eq.s32.totalorder %s9, 3
      %p40 = por %p38, %p39
      %p41 = scmp.ne.s32.totalorder %s33, %s36
      %p42 = scmp.eq.s32.totalorder %s9, 0
      %p43 = por %p41, %p42
      %p44 = scmp.ne.s32.totalorder %s33, %s36
      %p45 = scmp.eq.s32.totalorder %s14, 3
      %p46 = por %p44, %p45
      %p47 = scmp.ne.s32.totalorder %s36, %s37
      %p48 = scmp.eq.s32.totalorder %s14, 0
      %p49 = por %p47, %p48
      %p50 = scmp.ne.s32.totalorder %s36, %s37
      %p51 = scmp.eq.s32.totalorder %s15, 3
      %p52 = por %p50, %p51
      %p54 = scmp.ne.s32.totalorder %s37, %s53
      %p55 = scmp.eq.s32.totalorder %s15, 0
      %p56 = por %p54, %p55
      %s58 = sadd.s32 %s57, 1
      %p61 = scmp.eq.s32.totalorder %s9, 3
      %p62 = scmp.ne.s32.totalorder %s57, %s59
      %p63 = scmp.eq.s32.totalorder %s9, 0
      %p64 = por %p62, %p63
      %p65 = scmp.ne.s32.totalorder %s57, %s59
      %p66 = scmp.eq.s32.totalorder %s14, 3
      %p67 = por %p65, %p66
      %p68 = scmp.ne.s32.totalorder %s59, %s60
      %p69 = scmp.eq.s32.totalorder %s14, 0
      %p70 = por %p68, %p69
      %p71 = scmp.ne.s32.totalorder %s59, %s60
      %p72 = scmp.eq.s32.totalorder %s15, 3
      %p73 = por %p71, %p72
      %p75 = scmp.ne.s32.totalorder %s60, %s74
      %p76 = scmp.eq.s32.totalorder %s15, 0
      %p77 = por %p75, %p76
      %s79 = sadd.s32 %s78, 1
      %p82 = scmp.eq.s32.totalorder %s9, 3
      %p83 = scmp.ne.s32.totalorder %s78, %s80
      %p84 = scmp.eq.s32.totalorder %s9, 0
      %p85 = por %p83, %p84
      %p86 = scmp.ne.s32.totalorder %s78, %s80
      %p87 = scmp.eq.s32.totalorder %s14, 3
      %p88 = por %p86, %p87
      %p89 = scmp.ne.s32.totalorder %s80, %s81
      %p90 = scmp.eq.s32.totalorder %s14, 0
      %p91 = por %p89, %p90
      %p92 = scmp.ne.s32.totalorder %s80, %s81
      %p93 = scmp.eq.s32.totalorder %s15, 3
      %p94 = por %p92, %p93
      %p96 = scmp.ne.s32.totalorder %s81, %s95
      %p97 = scmp.eq.s32.totalorder %s15, 0
      %p98 = por %p96, %p97
      %s99 = ssub.s32 %s16, %s28
      %s100 = ssub.s32 %s17, %s24
      %s101 = sor.u32 %s99, %s100
      %p102 = scmp.eq.s32.totalorder %s101, 0
      %s104 = sadd.s32 %s103, 1
      %s105 = scalar_select %p102, %s103, %s104
      %p108 = pneg %p102
      %p109 = scmp.eq.s32.totalorder %s9, 3
      %p110 = por %p108, %p109
      %p111 = scmp.ne.s32.totalorder %s103, %s106
      %p112 = scmp.eq.s32.totalorder %s9, 0
      %p113 = por %p111, %p112
      %p114 = scmp.ne.s32.totalorder %s103, %s106
      %p115 = scmp.eq.s32.totalorder %s14, 3
      %p116 = por %p114, %p115
      %p117 = scmp.ne.s32.totalorder %s106, %s107
      %p118 = scmp.eq.s32.totalorder %s14, 0
      %p119 = por %p117, %p118
      %p120 = scmp.ne.s32.totalorder %s106, %s107
      %p121 = scmp.eq.s32.totalorder %s15, 3
      %p122 = por %p120, %p121
      %p124 = scmp.ne.s32.totalorder %s107, %s123
      %p125 = scmp.eq.s32.totalorder %s15, 0
      %p126 = por %p124, %p125
      %p127 = scmp.le.s32.totalorder 1, %s9
      %p128 = scmp.lt.s32.totalorder %s9, 5
      %p129 = pnand %p127, %p128
      %p130 = pneg %p129
      // Predicated region
      $region9: #{tpu_custom_call.1} parent=5 // pred_check
        _
      $region10: #{tpu_custom_call.1} parent=5 // pred_check_branch
        %132 = sbr.rel (%p129) target = $region12
      $region11: #{tpu_custom_call.1} parent=5 // pred_region
        %s133 = ssub.s32 %s9, 1
        // Predicated region
        $region13: #{tpu_custom_call.1} parent=11 // pred_check
          %p134 = pneg %p70
        $region14: #{tpu_custom_call.1} parent=11 // pred_check_branch
          %136 = sbr.rel (%p134) target = $region16
        $region15: #{tpu_custom_call.1} parent=11 // pred_region
          _
        $region16: #{tpu_custom_call.1} parent=11 // pred_fallthru
          _
        // Predicated region
        $region17: #{tpu_custom_call.1} parent=11 // pred_check
          %p137 = pneg %p91
        $region18: #{tpu_custom_call.1} parent=11 // pred_check_branch
          %139 = sbr.rel (%p137) target = $region20
        $region19: #{tpu_custom_call.1} parent=11 // pred_region
          _
        $region20: #{tpu_custom_call.1} parent=11 // pred_fallthru
          _
      $region12: #{tpu_custom_call.1} parent=5 // pred_fallthru
        _
      %p140 = scmp.lt.s32.totalorder %s9, 4
      // Predicated region
      $region21: #{tpu_custom_call.1} parent=5 // pred_check
        %p141 = pneg %p140
      $region22: #{tpu_custom_call.1} parent=5 // pred_check_branch
        %143 = sbr.rel (%p141) target = $region24
      $region23: #{tpu_custom_call.1} parent=5 // pred_region
        // Predicated region
        $region25: #{tpu_custom_call.1} parent=23 // pred_check
          %p144 = pneg %p43
        $region26: #{tpu_custom_call.1} parent=23 // pred_check_branch
          %146 = sbr.rel (%p144) target = $region28
        $region27: #{tpu_custom_call.1} parent=23 // pred_region
          %s147 = sand.u32 %s33, 1
          %s148 = sand.u32 %s33, 1
          %s149 = smul.addr %s148, 40
          %s150 = scalar_lea.vmem [#allocation2], %s149
          %s151 = smul.addr %s16, 10
          %s152 = sadd.s32 %s17, %s151
          %s153 = smul.addr %s152, 8
          %s154 = scalar_lea.vmem %s0, %s153
          // Predicated region
          $region29: #{tpu_custom_call.1} parent=27 // pred_check
            _
          $region30: #{tpu_custom_call.1} parent=27 // pred_check_branch
            %156 = sbr.rel (0) target = $region32
          $region31: #{tpu_custom_call.1} parent=27 // pred_region
            // Predicated region
            $region33: #{tpu_custom_call.1} parent=31 // pred_check
              _
            $region34: #{tpu_custom_call.1} parent=31 // pred_check_branch
              %158 = sbr.rel (0) target = $region36
            $region35: #{tpu_custom_call.1} parent=31 // pred_region
              // Predicated region
              $region48: #{tpu_custom_call.1} parent=35 // pred_check
                _
              $region49: #{tpu_custom_call.1} parent=35 // pred_check_branch
                %181 = sbr.rel (0) target = $region51
              $region50: #{tpu_custom_call.1} parent=35 // pred_region
                loop: start=0, step=1, limit=1
                $region52: #{tpu_custom_call.1} parent=50 // loop_pre_header
                  _
                $region53: #{tpu_custom_call.1} parent=50 // loop_header
                  %s183 = sphi 0, %s187
                  %p184 = scmp.ge.s32.totalorder %s183, 1
                  %s188 = sphi %s154, %s154
                  %s189 = sphi %s150, %s150
                $region54: #{tpu_custom_call.1} parent=50 // loop_header_branch
                  %186 = sbr.rel (%p184) target = $region58
                $region55: #{tpu_custom_call.1} parent=50 // loop_body
                  %v190 = vld [vmem:[%s188] sm:$0xff]
                  %191 = vst [vmem:[%s189] sm:$0xff] %v190
                  %v192 = vld [vmem:[%s188 + $0x10] sm:$0xff]
                  %193 = vst [vmem:[%s189 + $0x8] sm:$0xff] %v192
                  %v194 = vld [vmem:[%s188 + $0x20] sm:$0xff]
                  %195 = vst [vmem:[%s189 + $0x10] sm:$0xff] %v194
                  %v196 = vld [vmem:[%s188 + $0x30] sm:$0xff]
                  %197 = vst [vmem:[%s189 + $0x18] sm:$0xff] %v196
                  %v198 = vld [vmem:[%s188 + $0x40] sm:$0xff]
                  %199 = vst [vmem:[%s189 + $0x20] sm:$0xff] %v198
                $region56: #{tpu_custom_call.1} parent=50 // loop_footer
                  %s187 = sadd.s32 1, %s183
                $region57: #{tpu_custom_call.1} parent=50 // loop_footer_branch
                  %182 = sbr.rel target = $region53
                $region58: #{tpu_custom_call.1} parent=50 // loop_exit
                  _
              $region51: #{tpu_custom_call.1} parent=35 // pred_fallthru
                _
              // Predicated region
              $region59: #{tpu_custom_call.1} parent=35 // pred_check
                _
              $region60: #{tpu_custom_call.1} parent=35 // pred_check_branch
                %201 = sbr.rel target = $region62
              $region61: #{tpu_custom_call.1} parent=35 // pred_region
                _
              $region62: #{tpu_custom_call.1} parent=35 // pred_fallthru
                _
            $region36: #{tpu_custom_call.1} parent=31 // pred_fallthru
              _
            // Predicated region
            $region37: #{tpu_custom_call.1} parent=31 // pred_check
              _
            $region38: #{tpu_custom_call.1} parent=31 // pred_check_branch
              %160 = sbr.rel target = $region40
            $region39: #{tpu_custom_call.1} parent=31 // pred_region
              loop: start=0, step=1, limit=1
              $region41: #{tpu_custom_call.1} parent=39 // loop_pre_header
                _
              $region42: #{tpu_custom_call.1} parent=39 // loop_header
                %s163 = sphi 0, %s167
                %p164 = scmp.ge.s32.totalorder %s163, 1
                %s168 = sphi %s154, %s154
                %s169 = sphi %s150, %s150
              $region43: #{tpu_custom_call.1} parent=39 // loop_header_branch
                %166 = sbr.rel (%p164) target = $region47
              $region44: #{tpu_custom_call.1} parent=39 // loop_body
                %v170 = vld [vmem:[%s168] sm:$0xff]
                %171 = vst [vmem:[%s169] sm:$0xff] %v170
                %v172 = vld [vmem:[%s168 + $0x10] sm:$0xff]
                %173 = vst [vmem:[%s169 + $0x8] sm:$0xff] %v172
                %v174 = vld [vmem:[%s168 + $0x20] sm:$0xff]
                %175 = vst [vmem:[%s169 + $0x10] sm:$0xff] %v174
                %v176 = vld [vmem:[%s168 + $0x30] sm:$0xff]
                %177 = vst [vmem:[%s169 + $0x18] sm:$0xff] %v176
                %v178 = vld [vmem:[%s168 + $0x40] sm:$0xff]
                %179 = vst [vmem:[%s169 + $0x20] sm:$0xff] %v178
              $region45: #{tpu_custom_call.1} parent=39 // loop_footer
                %s167 = sadd.s32 1, %s163
              $region46: #{tpu_custom_call.1} parent=39 // loop_footer_branch
                %162 = sbr.rel target = $region42
              $region47: #{tpu_custom_call.1} parent=39 // loop_exit
                _
            $region40: #{tpu_custom_call.1} parent=31 // pred_fallthru
              _
          $region32: #{tpu_custom_call.1} parent=27 // pred_fallthru
            _
          %202 = vnop
        $region28: #{tpu_custom_call.1} parent=23 // pred_fallthru
          _
      $region24: #{tpu_custom_call.1} parent=5 // pred_fallthru
        _
      %p203 = scmp.le.s32.totalorder 1, %s9
      %p204 = scmp.lt.s32.totalorder %s9, 5
      %p205 = pnand %p203, %p204
      %p206 = pneg %p205
      // Predicated region
      $region63: #{tpu_custom_call.1} parent=5 // pred_check
        _
      $region64: #{tpu_custom_call.1} parent=5 // pred_check_branch
        %208 = sbr.rel (%p205) target = $region66
      $region65: #{tpu_custom_call.1} parent=5 // pred_region
        %s209 = ssub.s32 %s9, 1
        %s210 = sand.u32 %s36, 1
        %s211 = sand.u32 %s36, 1
        %s212 = smul.addr %s211, 40
        %s213 = scalar_lea.vmem [#allocation2], %s212
        // Predicated region
        $region67: #{tpu_custom_call.1} parent=65 // pred_check
          %p214 = pneg %p49
        $region68: #{tpu_custom_call.1} parent=65 // pred_check_branch
          %216 = sbr.rel (%p214) target = $region70
        $region69: #{tpu_custom_call.1} parent=65 // pred_region
          _
        $region70: #{tpu_custom_call.1} parent=65 // pred_fallthru
          _
        %s217 = sand.u32 %s36, 1
        %s218 = sand.u32 %s36, 1
        %s219 = smul.addr %s218, 40
        %s220 = scalar_lea.vmem [#allocation2], %s219
        %p221 = pneg %p49
        %p222 = pneg %p46
        %p223 = pneg %p70
        %p224 = pneg %p67
        %p225 = pneg %p91
        %p226 = pneg %p88
        %p227 = pneg %p119
        %p228 = pneg %p116
        %s229 = sand.u32 %s106, 1
        %s230 = sand.u32 %s106, 1
        %s231 = smul.addr %s230, 32
        %s232 = scalar_lea.vmem [#allocation3], %s231
        %v233 = vld [vmem:[%s1] sm:$0xff]
        %v234 = vld [vmem:[%s1 + $0x8] sm:$0xff]
        %v235 = vld [vmem:[%s1 + $0x10] sm:$0xff]
        %v236 = vld [vmem:[%s1 + $0x18] sm:$0x7]
        %v237 = vld [vmem:[%s213] sm:$0xff]
        %v238 = vld [vmem:[%s213 + $0x8] sm:$0xff]
        %v239 = vld [vmem:[%s213 + $0x10] sm:$0xff]
        %v240 = vld [vmem:[%s213 + $0x18] sm:$0xff]
        %v241 = vld [vmem:[%s213 + $0x20] sm:$0xf]
        %v242 = vld [vmem:[%s2] sm:$0xff]
        %v243 = vld [vmem:[%s2 + $0x8] sm:$0xff]
        %v244 = vld [vmem:[%s2 + $0x10] sm:$0xff]
        %v245 = vld [vmem:[%s2 + $0x18] sm:$0x7]
        %247 = vset.pattern.permute.xlu0 0
        %248 = vperm.xlu0 %247, %v242
        %v249 = vpop.permute.xlu0 %248
        %252 = vset.pattern.permute.xlu0 0
        %253 = vperm.xlu0 %252, %v243
        %v254 = vpop.permute.xlu0 %253
        %257 = vset.pattern.permute.xlu0 0
        %258 = vperm.xlu0 %257, %v244
        %v259 = vpop.permute.xlu0 %258
        %262 = vset.pattern.permute.xlu0 0
        %263 = vperm.xlu0 %262, %v245
        %v264 = vpop.permute.xlu0 %263
        %vm266 = vcmask 293888
        %v268 = vsel %vm266, %v233, 0
        %v271 = vsel %vm266, %v234, 0
        %v274 = vsel %vm266, %v235, 0
        %v277 = vsel %vm266, %v236, 0
        %vm279 = vcmask 1043456
        %v281 = vsel %vm279, %v241, 0
        %283 = vmatprep.subr.mxu0 0.0
        %284 = vmatpush1.msra.mxu0 %v237
        %285 = vmatprep.subr.mxu0 0.0
        %286 = vmatpush1.msra.mxu0 %v238
        %287 = vmatprep.subr.mxu0 0.0
        %288 = vmatpush1.msra.mxu0 %v239
        %289 = vmatprep.subr.mxu0 0.0
        %290 = vmatpush1.msra.mxu0 %v240
        %291 = vmatprep.subr.mxu0 0.0
        %292 = vmatpush1.msra.mxu0 %v281
        %293 = vmatprep.subr.mxu0 0.0
        %294 = vmatpush1.msra.mxu0 0.0
        %295 = vmatprep.subr.mxu0 0.0
        %296 = vmatpush1.msra.mxu0 0.0
        %297 = vmatprep.subr.mxu0 0.0
        %298 = vmatpush1.msra.mxu0 0.0
        %299 = vmatprep.subr.mxu0 0.0
        %300 = vmatpush1.msra.mxu0 0.0
        %301 = vmatprep.subr.mxu0 0.0
        %302 = vmatpush1.msra.mxu0 0.0
        %303 = vmatprep.subr.mxu0 0.0
        %304 = vmatpush1.msra.mxu0 0.0
        %305 = vmatprep.subr.mxu0 0.0
        %306 = vmatpush1.msra.mxu0 0.0
        %307 = vmatprep.subr.mxu0 0.0
        %308 = vmatpush1.msra.mxu0 0.0
        %309 = vmatprep.subr.mxu0 0.0
        %310 = vmatpush1.msra.mxu0 0.0
        %311 = vmatprep.subr.mxu0 0.0
        %312 = vmatpush1.msra.mxu0 0.0
        %313 = vmatprep.subr.mxu0 0.0
        %314 = vmatpush1.msra.mxu0 0.0
        %315 = vmatprep.subr.mxu0 0.0
        %316 = vmatpush1.msra.mxu0 0.0
        %317 = vmatprep.subr.mxu0 0.0
        %318 = vmatpush1.msra.mxu0 0.0
        %319 = vmatprep.subr.mxu0 0.0
        %320 = vmatpush1.msra.mxu0 0.0
        %321 = vmatprep.subr.mxu0 0.0
        %322 = vmatpush1.msra.mxu0 0.0
        %323 = vmatprep.subr.mxu0 0.0
        %324 = vmatpush1.msra.mxu0 0.0
        %325 = vmatprep.subr.mxu0 0.0
        %326 = vmatpush1.msra.mxu0 0.0
        %327 = vmatprep.subr.mxu0 0.0
        %328 = vmatpush1.msra.mxu0 0.0
        %329 = vmatprep.subr.mxu0 0.0
        %330 = vmatpush1.msra.mxu0 0.0
        %331 = vmatprep.subr.mxu0 0.0
        %332 = vmatpush1.msra.mxu0 0.0
        %333 = vmatprep.subr.mxu0 0.0
        %334 = vmatpush1.msra.mxu0 0.0
        %335 = vmatprep.subr.mxu0 0.0
        %336 = vmatpush1.msra.mxu0 0.0
        %337 = vmatprep.subr.mxu0 0.0
        %338 = vmatpush1.msra.mxu0 0.0
        %339 = vmatprep.subr.mxu0 0.0
        %340 = vmatpush1.msra.mxu0 0.0
        %341 = vmatprep.subr.mxu0 0.0
        %342 = vmatpush1.msra.mxu0 0.0
        %343 = vmatprep.subr.mxu0 0.0
        %344 = vmatpush1.msra.mxu0 0.0
        %345 = vmatprep.subr.mxu0 0.0
        %346 = vmatpush1.msra.mxu0 0.0
        %347 = vmatprep.mubr.f32.mxu0 0.0
        %348 = vmatmul.mubr.f32.gmra.mrb[0].mxu0 %v268
        %v349 = vpop.f32.mrb[0].mxu0
        %v350 = vadd.f32 %v249, %v349
        %v351 = vpop.f32.mrb[0].mxu0
        %352 = vmatprep.mubr.f32.mxu0 0.0
        %353 = vmatmul.mubr.f32.gmra.mrb[0].mxu0 %v271
        %v354 = vpop.f32.mrb[0].mxu0
        %v355 = vadd.f32 %v254, %v354
        %v356 = vpop.f32.mrb[0].mxu0
        %357 = vmatprep.mubr.f32.mxu0 0.0
        %358 = vmatmul.mubr.f32.gmra.mrb[0].mxu0 %v274
        %v359 = vpop.f32.mrb[0].mxu0
        %v360 = vadd.f32 %v259, %v359
        %v361 = vpop.f32.mrb[0].mxu0
        %362 = vmatprep.mubr.f32.mxu0 0.0
        %363 = vmatmul.mubr.f32.gmra.mrb[0].mxu0 %v277
        %v364 = vpop.f32.mrb[0].mxu0
        %v365 = vadd.f32 %v264, %v364
        %v366 = vpop.f32.mrb[0].mxu0
        %367 = vdwg.mxu0
        %368 = vst [vmem:[%s232] sm:$0xff] %v350
        %369 = vst [vmem:[%s232 + $0x8] sm:$0xff] %v355
        %370 = vst [vmem:[%s232 + $0x10] sm:$0xff] %v360
        %371 = vst [vmem:[%s232 + $0x18] sm:$0x7] %v365
        %s372 = sand.u32 %s106, 1
        %s373 = sand.u32 %s106, 1
        %s374 = smul.addr %s373, 32
        %s375 = scalar_lea.vmem [#allocation3], %s374
        // Predicated region
        $region71: #{tpu_custom_call.1} parent=65 // pred_check
          %p376 = pneg %p116
        $region72: #{tpu_custom_call.1} parent=65 // pred_check_branch
          %378 = sbr.rel (%p376) target = $region74
        $region73: #{tpu_custom_call.1} parent=65 // pred_region
          %s379 = smul.addr %s18, 8
          %s380 = sadd.s32 %s19, %s379
          %s381 = smul.addr %s380, 8
          %s382 = scalar_lea.vmem %s3, %s381
          // Predicated region
          $region75: #{tpu_custom_call.1} parent=73 // pred_check
            _
          $region76: #{tpu_custom_call.1} parent=73 // pred_check_branch
            %384 = sbr.rel (0) target = $region78
          $region77: #{tpu_custom_call.1} parent=73 // pred_region
            // Predicated region
            $region79: #{tpu_custom_call.1} parent=77 // pred_check
              _
            $region80: #{tpu_custom_call.1} parent=77 // pred_check_branch
              %386 = sbr.rel (0) target = $region82
            $region81: #{tpu_custom_call.1} parent=77 // pred_region
              // Predicated region
              $region94: #{tpu_custom_call.1} parent=81 // pred_check
                _
              $region95: #{tpu_custom_call.1} parent=81 // pred_check_branch
                %407 = sbr.rel (0) target = $region97
              $region96: #{tpu_custom_call.1} parent=81 // pred_region
                loop: start=0, step=1, limit=1
                $region98: #{tpu_custom_call.1} parent=96 // loop_pre_header
                  _
                $region99: #{tpu_custom_call.1} parent=96 // loop_header
                  %s409 = sphi 0, %s413
                  %p410 = scmp.ge.s32.totalorder %s409, 1
                  %s414 = sphi %s375, %s375
                  %s415 = sphi %s382, %s382
                $region100: #{tpu_custom_call.1} parent=96 // loop_header_branch
                  %412 = sbr.rel (%p410) target = $region104
                $region101: #{tpu_custom_call.1} parent=96 // loop_body
                  %v416 = vld [vmem:[%s414] sm:$0xff]
                  %417 = vst [vmem:[%s415] sm:$0xff] %v416
                  %v418 = vld [vmem:[%s414 + $0x8] sm:$0xff]
                  %419 = vst [vmem:[%s415 + $0x10] sm:$0xff] %v418
                  %v420 = vld [vmem:[%s414 + $0x10] sm:$0xff]
                  %421 = vst [vmem:[%s415 + $0x20] sm:$0xff] %v420
                  %v422 = vld [vmem:[%s414 + $0x18] sm:$0xff]
                  %423 = vst [vmem:[%s415 + $0x30] sm:$0xff] %v422
                $region102: #{tpu_custom_call.1} parent=96 // loop_footer
                  %s413 = sadd.s32 1, %s409
                $region103: #{tpu_custom_call.1} parent=96 // loop_footer_branch
                  %408 = sbr.rel target = $region99
                $region104: #{tpu_custom_call.1} parent=96 // loop_exit
                  _
              $region97: #{tpu_custom_call.1} parent=81 // pred_fallthru
                _
              // Predicated region
              $region105: #{tpu_custom_call.1} parent=81 // pred_check
                _
              $region106: #{tpu_custom_call.1} parent=81 // pred_check_branch
                %425 = sbr.rel target = $region108
              $region107: #{tpu_custom_call.1} parent=81 // pred_region
                _
              $region108: #{tpu_custom_call.1} parent=81 // pred_fallthru
                _
            $region82: #{tpu_custom_call.1} parent=77 // pred_fallthru
              _
            // Predicated region
            $region83: #{tpu_custom_call.1} parent=77 // pred_check
              _
            $region84: #{tpu_custom_call.1} parent=77 // pred_check_branch
              %388 = sbr.rel target = $region86
            $region85: #{tpu_custom_call.1} parent=77 // pred_region
              loop: start=0, step=1, limit=1
              $region87: #{tpu_custom_call.1} parent=85 // loop_pre_header
                _
              $region88: #{tpu_custom_call.1} parent=85 // loop_header
                %s391 = sphi 0, %s395
                %p392 = scmp.ge.s32.totalorder %s391, 1
                %s396 = sphi %s375, %s375
                %s397 = sphi %s382, %s382
              $region89: #{tpu_custom_call.1} parent=85 // loop_header_branch
                %394 = sbr.rel (%p392) target = $region93
              $region90: #{tpu_custom_call.1} parent=85 // loop_body
                %v398 = vld [vmem:[%s396] sm:$0xff]
                %399 = vst [vmem:[%s397] sm:$0xff] %v398
                %v400 = vld [vmem:[%s396 + $0x8] sm:$0xff]
                %401 = vst [vmem:[%s397 + $0x10] sm:$0xff] %v400
                %v402 = vld [vmem:[%s396 + $0x10] sm:$0xff]
                %403 = vst [vmem:[%s397 + $0x20] sm:$0xff] %v402
                %v404 = vld [vmem:[%s396 + $0x18] sm:$0xff]
                %405 = vst [vmem:[%s397 + $0x30] sm:$0xff] %v404
              $region91: #{tpu_custom_call.1} parent=85 // loop_footer
                %s395 = sadd.s32 1, %s391
              $region92: #{tpu_custom_call.1} parent=85 // loop_footer_branch
                %390 = sbr.rel target = $region88
              $region93: #{tpu_custom_call.1} parent=85 // loop_exit
                _
            $region86: #{tpu_custom_call.1} parent=77 // pred_fallthru
              _
          $region78: #{tpu_custom_call.1} parent=73 // pred_fallthru
            _
          %426 = vnop
        $region74: #{tpu_custom_call.1} parent=65 // pred_fallthru
          _
      $region66: #{tpu_custom_call.1} parent=5 // pred_fallthru
        _
      %p427 = scmp.le.s32.totalorder 2, %s9
      // Predicated region
      $region109: #{tpu_custom_call.1} parent=5 // pred_check
        %p428 = pneg %p427
      $region110: #{tpu_custom_call.1} parent=5 // pred_check_branch
        %430 = sbr.rel (%p428) target = $region112
      $region111: #{tpu_custom_call.1} parent=5 // pred_region
        %s431 = ssub.s32 %s9, 2
        // Predicated region
        $region113: #{tpu_custom_call.1} parent=111 // pred_check
          %p432 = pneg %p122
        $region114: #{tpu_custom_call.1} parent=111 // pred_check_branch
          %434 = sbr.rel (%p432) target = $region116
        $region115: #{tpu_custom_call.1} parent=111 // pred_region
          %s435 = sand.u32 %s107, 1
          %s436 = sand.u32 %s107, 1
          %s437 = smul.addr %s436, 32
          %s438 = scalar_lea.vmem [#allocation3], %s437
        $region116: #{tpu_custom_call.1} parent=111 // pred_fallthru
          _
      $region112: #{tpu_custom_call.1} parent=5 // pred_fallthru
        _
    $region6: #{tpu_custom_call.1} parent=1 // loop_footer
      %s13 = sadd.s32 1, %s9
    $region7: #{tpu_custom_call.1} parent=1 // loop_footer_branch
      %8 = sbr.rel target = $region3
    $region8: #{tpu_custom_call.1} parent=1 // loop_exit
      _

</llo_original>
